<compile_context>
chip_gen: v5e
topology: v5e:2x2
jax: 0.10.0
libtpu: 0.0.40
codegen_flags: <defaults>
</compile_context>

<pallas_src>
import math
import functools

import jax
import jax.numpy as jnp
from jax.experimental import pallas as pl
from jax.experimental.pallas import tpu as pltpu


LEAKY_SLOPE = 0.01  # torch.nn.LeakyReLU default negative_slope


def _leaky_relu(x):
    return jnp.where(x > 0, x, LEAKY_SLOPE * x)


def _round_up(n, m):
    return ((n + m - 1) // m) * m


def timestep_embedding_jax(t, dim, max_period=10000.0):
    """JAX mirror of torchcfm's sinusoidal timestep_embedding (t is 1-D)."""
    half = dim // 2
    freqs = jnp.exp(
        -math.log(max_period) * jnp.arange(half, dtype=jnp.float32) / half)
    args = t.astype(jnp.float32)[:, None] * freqs[None, :]
    emb = jnp.concatenate([jnp.cos(args), jnp.sin(args)], axis=-1)
    if dim % 2:
        emb = jnp.concatenate([emb, jnp.zeros_like(emb[:, :1])], axis=-1)
    return emb


def _mvf_kernel(x_ref, w_ref, o_ref, *, entries, data_dim, dt, r):
    """One lane-dense batch tile.

    x_ref : (DT+2, Bt)  rows [0:D]=data^T, [D:DT]=temb^T, row DT=cond, DT+1=t
    w_ref : (5*R, C)    fused block-diagonal MLP weights + biases (see wrapper)
    o_ref : (D, Bt)     routed output (transposed), written exactly once
    """
    D = data_dim
    x = x_ref[...]
    x10 = x[0:dt, :]               # (DT, Bt)  [data^T ; temb^T]
    crow = x[dt:dt + 1, :]         # (1, Bt)   class / condition
    trow = x[dt + 1:dt + 2, :]     # (1, Bt)   time

    S = w_ref[...]
    w1 = S[0 * r:1 * r, 0:dt]      # (R, DT)   stacked W1^T (rows >= NE*H are zero)
    w2 = S[1 * r:2 * r, 0:r]       # (R, R)    block-diagonal W2^T
    w3 = S[2 * r:3 * r, 0:r]       # (R, R)    block-diagonal W3^T
    w4 = S[3 * r:4 * r, 0:r]       # (R, R)    block-diagonal W4^T (rows >= NE*D zero)
    b1 = S[4 * r:5 * r, 0:1]       # (R, 1)
    b2 = S[4 * r:5 * r, 1:2]
    b3 = S[4 * r:5 * r, 2:3]
    b4 = S[4 * r:5 * r, 3:4]

    # All routing entries computed in 4 matmuls (MXU N = batch lanes).
    h = _leaky_relu(jnp.dot(w1, x10, preferred_element_type=jnp.float32) + b1)
    h = _leaky_relu(jnp.dot(w2, h, preferred_element_type=jnp.float32) + b2)
    h = _leaky_relu(jnp.dot(w3, h, preferred_element_type=jnp.float32) + b3)
    y = jnp.dot(w4, h, preferred_element_type=jnp.float32) + b4      # (R, Bt)

    # Masked weighted sum over the NE groups; single full-width store at the end.
    acc = jnp.zeros((D, trow.shape[-1]), jnp.float32)
    for e, (cls, t1, t2) in enumerate(entries):       # bounds are compile-time consts
        m = ((trow >= t1) & (trow < t2) & (crow == cls)).astype(jnp.float32)  # (1, Bt)
        acc = acc + m * y[e * D:(e + 1) * D, :]
    o_ref[...] = acc


def multi_vector_field_forward(x, params, entries, *, data_dim, hidden,
                               time_embed_dim, batch_tile=256):
    """entries: list of (class, t1, t2, model_id); params: per-model stacks."""
    B = x.shape[0]
    D, H, T = data_dim, hidden, time_embed_dim
    NE = len(entries)
    DT = D + T
    assert B % batch_tile == 0, "demo keeps B a multiple of the batch tile"
    assert batch_tile % 128 == 0, "keep the batch tile lane-dense"

    data = x[:, :D].astype(jnp.float32)
    cond = x[:, D].astype(jnp.float32)
    t = x[:, D + 1].astype(jnp.float32)

    # Hoisted, model-invariant sinusoidal embedding (plain XLA, computed once).
    temb = timestep_embedding_jax(t * 1000.0, T)                       # (B, T)

    # Single packed, transposed (lane-dense) input slab: one DMA per grid step.
    xin = jnp.concatenate(
        [data, temb, cond[:, None], t[:, None]], axis=1).T             # (DT+2, B)

    # ---- Fused block-diagonal weight slab (one VMEM-resident input) ----------
    NH, ND = NE * H, NE * D
    R = _round_up(max(NH, ND), 8)
    C = max(R, _round_up(DT, 8))
    slab = jnp.zeros((5 * R, C), jnp.float32)
    for e, (_, _, _, m) in enumerate(entries):
        slab = slab.at[e * H:(e + 1) * H, 0:DT].set(params["w1"][m].T)
        slab = slab.at[R + e * H:R + (e + 1) * H,
                       e * H:(e + 1) * H].set(params["w2"][m].T)
        slab = slab.at[2 * R + e * H:2 * R + (e + 1) * H,
                       e * H:(e + 1) * H].set(params["w3"][m].T)
        slab = slab.at[3 * R + e * D:3 * R + (e + 1) * D,
                       e * H:(e + 1) * H].set(params["w4"][m].T)
        slab = slab.at[4 * R + e * H:4 * R + (e + 1) * H, 0].set(params["b1"][m][0])
        slab = slab.at[4 * R + e * H:4 * R + (e + 1) * H, 1].set(params["b2"][m][0])
        slab = slab.at[4 * R + e * H:4 * R + (e + 1) * H, 2].set(params["b3"][m][0])
        slab = slab.at[4 * R + e * D:4 * R + (e + 1) * D, 3].set(params["b4"][m][0])

    kernel = functools.partial(
        _mvf_kernel,
        entries=tuple((float(c), float(a), float(b)) for (c, a, b, _) in entries),
        data_dim=D, dt=DT, r=R)

    out_t = pl.pallas_call(
        kernel,
        out_shape=jax.ShapeDtypeStruct((D, B), jnp.float32),
        grid=(B // batch_tile,),
        in_specs=[
            pl.BlockSpec((DT + 2, batch_tile), lambda i: (0, i)),   # packed inputs
            pl.BlockSpec((5 * R, C), lambda i: (0, 0)),             # resident weights
        ],
        out_specs=pl.BlockSpec((D, batch_tile), lambda i: (0, i)),
        compiler_params=pltpu.CompilerParams(dimension_semantics=("parallel",)),
    )(xin, slab)
    return out_t.T                                                    # (B, D)


def init_model_params(key, n_models, D, H, T):
    """PyTorch-Linear-style uniform init, stacked over the model axis (f32)."""
    def linear(k, fan_in, fan_out):
        kw, kb = jax.random.split(k)
        bound = 1.0 / math.sqrt(fan_in)
        w = jax.random.uniform(kw, (n_models, fan_in, fan_out), jnp.float32, -bound, bound)
        b = jax.random.uniform(kb, (n_models, 1, fan_out), jnp.float32, -bound, bound)
        return w, b

    keys = jax.random.split(key, 4)
    w1, b1 = linear(keys[0], D + T, H)
    w2, b2 = linear(keys[1], H, H)
    w3, b3 = linear(keys[2], H, H)
    w4, b4 = linear(keys[3], H, D)
    return dict(w1=w1, b1=b1, w2=w2, b2=b2, w3=w3, b3=b3, w4=w4, b4=b4)


def reference_forward(x, params, entries, *, data_dim, hidden, time_embed_dim):
    """Pure-JAX reference mirroring the PyTorch MultiVectorFieldModel forward."""
    D, H, T = data_dim, hidden, time_embed_dim
    data = x[:, :D].astype(jnp.float32)
    cond = x[:, D]
    t = x[:, D + 1].astype(jnp.float32)

    temb = timestep_embedding_jax(t * 1000.0, T)
    x_total = jnp.concatenate([data, temb], axis=1)

    out = jnp.zeros((x.shape[0], D), jnp.float32)
    for (c, a, b, mid) in entries:
        mask = ((a <= t) & (t < b) & (cond == c)).astype(jnp.float32)[:, None]
        h = _leaky_relu(x_total @ params["w1"][mid] + params["b1"][mid])
        h = _leaky_relu(h @ params["w2"][mid] + params["b2"][mid])
        h = _leaky_relu(h @ params["w3"][mid] + params["b3"][mid])
        y = h @ params["w4"][mid] + params["b4"][mid]
        out = out + mask * y
    return out


if __name__ == "__main__":
    DATA_DIM, HIDDEN, TEMB_DIM = 4, 6, 6     # SimpleModel(dim, hidden=6, time_embed_dim=6)
    B, B_TILE = 512, 256                      # lane-dense batch tiles, even grid (v7x)

    # model_list = {class: [time knots]}, as in MultiVectorFieldModel.__init__
    model_list = {1: [0.0, 0.5, 1.0], 2: [0.0, 1.0]}

    # Build mapping_idx_to_tc exactly like the PyTorch constructor.
    entries = []                              # (class, t1, t2, model_id)
    idx = 1
    for c, t_list in model_list.items():
        for i in range(len(t_list) - 1):
            entries.append((float(c), float(t_list[i]), float(t_list[i + 1]), idx))
            idx += 1
    entries.append((0.0, 0.0, 1.0, 0))        # self.mapping_idx_to_tc[0][0, 1] = 0
    n_models = idx                            # == num_models + 1 model instances

    key = jax.random.PRNGKey(0)
    k_data, k_cond, k_t, k_params = jax.random.split(key, 4)

    data = jax.random.normal(k_data, (B, DATA_DIM), jnp.float32)
    cond = jax.random.randint(k_cond, (B, 1), 1, 3).astype(jnp.float32)   # classes {1, 2}
    t = jax.random.uniform(k_t, (B, 1), jnp.float32, 0.0, 1.0)
    x = jnp.concatenate([data, cond, t], axis=1)                          # (B, D + 2)

    params = init_model_params(k_params, n_models, DATA_DIM, HIDDEN, TEMB_DIM)

    y = multi_vector_field_forward(
        x, params, entries, data_dim=DATA_DIM, hidden=HIDDEN,
        time_embed_dim=TEMB_DIM, batch_tile=B_TILE)
    y = jax.block_until_ready(y)

    y_ref = reference_forward(
        x, params, entries, data_dim=DATA_DIM, hidden=HIDDEN,
        time_embed_dim=TEMB_DIM)
    y_ref = jax.block_until_ready(y_ref)

    assert y.shape == (B, DATA_DIM)
    assert jnp.allclose(y, y_ref, atol=1e-3, rtol=1e-3), "mismatch vs JAX reference"
    print("KERNEL_OK")
</pallas_src>

<mosaic_0001>
module attributes {stable_mosaic.version = 11 : i64} {
  func.func @_mvf_kernel(%arg0: i32, %arg1: memref<12x256xf32, #tpu.memory_space<vmem>>, %arg2: memref<120x24xf32, #tpu.memory_space<vmem>>, %arg3: memref<4x256xf32, #tpu.memory_space<vmem>>) attributes {dimension_semantics = [#tpu.dimension_semantics<parallel>], iteration_bounds = array<i64: 2>, scalar_prefetch = 0 : i64, scratch_operands = 0 : i64, tpu.core_type = #tpu.core_type<tc>, window_params = [{transform_indices = @transform_0, window_bounds = array<i64: 12, 256>}, {pipeline_mode = #tpu.pipeline_mode<synchronous>, transform_indices = @transform_1, window_bounds = array<i64: 120, 24>}, {transform_indices = @transform_2, window_bounds = array<i64: 4, 256>}]} {
    %c0 = arith.constant 0 : index
    %c0_0 = arith.constant 0 : index
    %0 = vector.load %arg1[%c0, %c0_0] : memref<12x256xf32, #tpu.memory_space<vmem>>, vector<12x256xf32>
    %1 = vector.extract_strided_slice %0 {offsets = [0, 0], sizes = [10, 256], strides = [1, 1]} : vector<12x256xf32> to vector<10x256xf32>
    %2 = vector.extract_strided_slice %0 {offsets = [10, 0], sizes = [1, 256], strides = [1, 1]} : vector<12x256xf32> to vector<1x256xf32>
    %3 = vector.extract_strided_slice %0 {offsets = [11, 0], sizes = [1, 256], strides = [1, 1]} : vector<12x256xf32> to vector<1x256xf32>
    %c0_1 = arith.constant 0 : index
    %c0_2 = arith.constant 0 : index
    %4 = vector.load %arg2[%c0_1, %c0_2] : memref<120x24xf32, #tpu.memory_space<vmem>>, vector<120x24xf32>
    %5 = vector.extract_strided_slice %4 {offsets = [0, 0], sizes = [24, 10], strides = [1, 1]} : vector<120x24xf32> to vector<24x10xf32>
    %6 = vector.extract_strided_slice %4 {offsets = [24, 0], sizes = [24, 24], strides = [1, 1]} : vector<120x24xf32> to vector<24x24xf32>
    %7 = vector.extract_strided_slice %4 {offsets = [48, 0], sizes = [24, 24], strides = [1, 1]} : vector<120x24xf32> to vector<24x24xf32>
    %8 = vector.extract_strided_slice %4 {offsets = [72, 0], sizes = [24, 24], strides = [1, 1]} : vector<120x24xf32> to vector<24x24xf32>
    %9 = vector.extract_strided_slice %4 {offsets = [96, 0], sizes = [24, 1], strides = [1, 1]} : vector<120x24xf32> to vector<24x1xf32>
    %10 = vector.extract_strided_slice %4 {offsets = [96, 1], sizes = [24, 1], strides = [1, 1]} : vector<120x24xf32> to vector<24x1xf32>
    %11 = vector.extract_strided_slice %4 {offsets = [96, 2], sizes = [24, 1], strides = [1, 1]} : vector<120x24xf32> to vector<24x1xf32>
    %12 = vector.extract_strided_slice %4 {offsets = [96, 3], sizes = [24, 1], strides = [1, 1]} : vector<120x24xf32> to vector<24x1xf32>
    %cst = arith.constant dense<0.000000e+00> : vector<24x256xf32>
    %13 = tpu.matmul %5, %1, %cst {dimension_numbers = #tpu.dot_dimension_numbers<[1], [0], [0], [1], [0, 0, 1, 1], [], []>} : vector<24x10xf32>, vector<10x256xf32>, vector<24x256xf32> -> vector<24x256xf32>
    %14 = vector.broadcast %9 : vector<24x1xf32> to vector<24x256xf32>
    %15 = arith.addf %13, %14 : vector<24x256xf32>
    %cst_3 = arith.constant 0.000000e+00 : f32
    %16 = vector.broadcast %cst_3 : f32 to vector<24x256xf32>
    %17 = arith.cmpf ogt, %15, %16 : vector<24x256xf32>
    %cst_4 = arith.constant 0.00999999977 : f32
    %18 = vector.broadcast %cst_4 : f32 to vector<24x256xf32>
    %19 = arith.mulf %18, %15 : vector<24x256xf32>
    %20 = arith.select %17, %15, %19 : vector<24x256xi1>, vector<24x256xf32>
    %cst_5 = arith.constant dense<0.000000e+00> : vector<24x256xf32>
    %21 = tpu.matmul %6, %20, %cst_5 {dimension_numbers = #tpu.dot_dimension_numbers<[1], [0], [0], [1], [0, 0, 1, 1], [], []>} : vector<24x24xf32>, vector<24x256xf32>, vector<24x256xf32> -> vector<24x256xf32>
    %22 = vector.broadcast %10 : vector<24x1xf32> to vector<24x256xf32>
    %23 = arith.addf %21, %22 : vector<24x256xf32>
    %cst_6 = arith.constant 0.000000e+00 : f32
    %24 = vector.broadcast %cst_6 : f32 to vector<24x256xf32>
    %25 = arith.cmpf ogt, %23, %24 : vector<24x256xf32>
    %cst_7 = arith.constant 0.00999999977 : f32
    %26 = vector.broadcast %cst_7 : f32 to vector<24x256xf32>
    %27 = arith.mulf %26, %23 : vector<24x256xf32>
    %28 = arith.select %25, %23, %27 : vector<24x256xi1>, vector<24x256xf32>
    %cst_8 = arith.constant dense<0.000000e+00> : vector<24x256xf32>
    %29 = tpu.matmul %7, %28, %cst_8 {dimension_numbers = #tpu.dot_dimension_numbers<[1], [0], [0], [1], [0, 0, 1, 1], [], []>} : vector<24x24xf32>, vector<24x256xf32>, vector<24x256xf32> -> vector<24x256xf32>
    %30 = vector.broadcast %11 : vector<24x1xf32> to vector<24x256xf32>
    %31 = arith.addf %29, %30 : vector<24x256xf32>
    %cst_9 = arith.constant 0.000000e+00 : f32
    %32 = vector.broadcast %cst_9 : f32 to vector<24x256xf32>
    %33 = arith.cmpf ogt, %31, %32 : vector<24x256xf32>
    %cst_10 = arith.constant 0.00999999977 : f32
    %34 = vector.broadcast %cst_10 : f32 to vector<24x256xf32>
    %35 = arith.mulf %34, %31 : vector<24x256xf32>
    %36 = arith.select %33, %31, %35 : vector<24x256xi1>, vector<24x256xf32>
    %cst_11 = arith.constant dense<0.000000e+00> : vector<24x256xf32>
    %37 = tpu.matmul %8, %36, %cst_11 {dimension_numbers = #tpu.dot_dimension_numbers<[1], [0], [0], [1], [0, 0, 1, 1], [], []>} : vector<24x24xf32>, vector<24x256xf32>, vector<24x256xf32> -> vector<24x256xf32>
    %38 = vector.broadcast %12 : vector<24x1xf32> to vector<24x256xf32>
    %39 = arith.addf %37, %38 : vector<24x256xf32>
    %cst_12 = arith.constant 0.000000e+00 : f32
    %40 = vector.broadcast %cst_12 : f32 to vector<4x256xf32>
    %cst_13 = arith.constant 0.000000e+00 : f32
    %41 = vector.broadcast %cst_13 : f32 to vector<1x256xf32>
    %42 = arith.cmpf oge, %3, %41 : vector<1x256xf32>
    %cst_14 = arith.constant 5.000000e-01 : f32
    %43 = vector.broadcast %cst_14 : f32 to vector<1x256xf32>
    %44 = arith.cmpf olt, %3, %43 : vector<1x256xf32>
    %45 = arith.andi %42, %44 : vector<1x256xi1>
    %cst_15 = arith.constant 1.000000e+00 : f32
    %46 = vector.broadcast %cst_15 : f32 to vector<1x256xf32>
    %47 = arith.cmpf oeq, %2, %46 : vector<1x256xf32>
    %48 = arith.andi %45, %47 : vector<1x256xi1>
    %49 = arith.extui %48 : vector<1x256xi1> to vector<1x256xi32>
    %50 = arith.sitofp %49 : vector<1x256xi32> to vector<1x256xf32>
    %51 = vector.extract_strided_slice %39 {offsets = [0, 0], sizes = [4, 256], strides = [1, 1]} : vector<24x256xf32> to vector<4x256xf32>
    %52 = vector.broadcast %50 : vector<1x256xf32> to vector<4x256xf32>
    %53 = arith.mulf %52, %51 : vector<4x256xf32>
    %54 = arith.addf %40, %53 : vector<4x256xf32>
    %cst_16 = arith.constant 5.000000e-01 : f32
    %55 = vector.broadcast %cst_16 : f32 to vector<1x256xf32>
    %56 = arith.cmpf oge, %3, %55 : vector<1x256xf32>
    %cst_17 = arith.constant 1.000000e+00 : f32
    %57 = vector.broadcast %cst_17 : f32 to vector<1x256xf32>
    %58 = arith.cmpf olt, %3, %57 : vector<1x256xf32>
    %59 = arith.andi %56, %58 : vector<1x256xi1>
    %cst_18 = arith.constant 1.000000e+00 : f32
    %60 = vector.broadcast %cst_18 : f32 to vector<1x256xf32>
    %61 = arith.cmpf oeq, %2, %60 : vector<1x256xf32>
    %62 = arith.andi %59, %61 : vector<1x256xi1>
    %63 = arith.extui %62 : vector<1x256xi1> to vector<1x256xi32>
    %64 = arith.sitofp %63 : vector<1x256xi32> to vector<1x256xf32>
    %65 = vector.extract_strided_slice %39 {offsets = [4, 0], sizes = [4, 256], strides = [1, 1]} : vector<24x256xf32> to vector<4x256xf32>
    %66 = vector.broadcast %64 : vector<1x256xf32> to vector<4x256xf32>
    %67 = arith.mulf %66, %65 : vector<4x256xf32>
    %68 = arith.addf %54, %67 : vector<4x256xf32>
    %cst_19 = arith.constant 0.000000e+00 : f32
    %69 = vector.broadcast %cst_19 : f32 to vector<1x256xf32>
    %70 = arith.cmpf oge, %3, %69 : vector<1x256xf32>
    %cst_20 = arith.constant 1.000000e+00 : f32
    %71 = vector.broadcast %cst_20 : f32 to vector<1x256xf32>
    %72 = arith.cmpf olt, %3, %71 : vector<1x256xf32>
    %73 = arith.andi %70, %72 : vector<1x256xi1>
    %cst_21 = arith.constant 2.000000e+00 : f32
    %74 = vector.broadcast %cst_21 : f32 to vector<1x256xf32>
    %75 = arith.cmpf oeq, %2, %74 : vector<1x256xf32>
    %76 = arith.andi %73, %75 : vector<1x256xi1>
    %77 = arith.extui %76 : vector<1x256xi1> to vector<1x256xi32>
    %78 = arith.sitofp %77 : vector<1x256xi32> to vector<1x256xf32>
    %79 = vector.extract_strided_slice %39 {offsets = [8, 0], sizes = [4, 256], strides = [1, 1]} : vector<24x256xf32> to vector<4x256xf32>
    %80 = vector.broadcast %78 : vector<1x256xf32> to vector<4x256xf32>
    %81 = arith.mulf %80, %79 : vector<4x256xf32>
    %82 = arith.addf %68, %81 : vector<4x256xf32>
    %cst_22 = arith.constant 0.000000e+00 : f32
    %83 = vector.broadcast %cst_22 : f32 to vector<1x256xf32>
    %84 = arith.cmpf oge, %3, %83 : vector<1x256xf32>
    %cst_23 = arith.constant 1.000000e+00 : f32
    %85 = vector.broadcast %cst_23 : f32 to vector<1x256xf32>
    %86 = arith.cmpf olt, %3, %85 : vector<1x256xf32>
    %87 = arith.andi %84, %86 : vector<1x256xi1>
    %cst_24 = arith.constant 0.000000e+00 : f32
    %88 = vector.broadcast %cst_24 : f32 to vector<1x256xf32>
    %89 = arith.cmpf oeq, %2, %88 : vector<1x256xf32>
    %90 = arith.andi %87, %89 : vector<1x256xi1>
    %91 = arith.extui %90 : vector<1x256xi1> to vector<1x256xi32>
    %92 = arith.sitofp %91 : vector<1x256xi32> to vector<1x256xf32>
    %93 = vector.extract_strided_slice %39 {offsets = [12, 0], sizes = [4, 256], strides = [1, 1]} : vector<24x256xf32> to vector<4x256xf32>
    %94 = vector.broadcast %92 : vector<1x256xf32> to vector<4x256xf32>
    %95 = arith.mulf %94, %93 : vector<4x256xf32>
    %96 = arith.addf %82, %95 : vector<4x256xf32>
    %c0_25 = arith.constant 0 : index
    %c0_26 = arith.constant 0 : index
    %97 = vector.load %arg3[%c0_25, %c0_26] : memref<4x256xf32, #tpu.memory_space<vmem>>, vector<4x256xf32>
    tpu.vector_store %arg3[%c0_25, %c0_26], %96 {strides = array<i32>} : memref<4x256xf32, #tpu.memory_space<vmem>>, vector<4x256xf32>,
    return
  }
  func.func @transform_0(%arg0: i32) -> (i32, i32) {
    %c0_i32 = arith.constant 0 : i32
    %c0_i32_0 = arith.constant 0 : i32
    return %c0_i32, %arg0 : i32, i32
  }
  func.func @transform_1(%arg0: i32) -> (i32, i32) {
    %c0_i32 = arith.constant 0 : i32
    %c0_i32_0 = arith.constant 0 : i32
    %c0_i32_1 = arith.constant 0 : i32
    return %c0_i32, %c0_i32_0 : i32, i32
  }
  func.func @transform_2(%arg0: i32) -> (i32, i32) {
    %c0_i32 = arith.constant 0 : i32
    %c0_i32_0 = arith.constant 0 : i32
    return %c0_i32, %arg0 : i32, i32
  }
}

</mosaic_0001>

<llo_original>
// kernel: tpu_custom_call.1
$region0: #{tpu_custom_call.1}
  #allocation0 [shape = 'u32[]', space=smem, size = 0x4, offset = 0x4, fixed_abs, tag = 'smem constant byte address 0x4 - core index']
  #allocation1 [shape = 'u32[72,128]{1,0:T(1,128)}', space=vmem, size = 0x9000, scoped, tag = 'internal scratch']
  %s0 = inlined_call_operand.vmem [shape: f32[12,512], index: 0, kind: input, shape index: {}]
  %s1 = inlined_call_operand.vmem [shape: f32[120,24], index: 1, kind: input, shape index: {}]
  %s2 = inlined_call_operand.hbm [shape: f32[4,512], index: 2, kind: output, shape index: {}]
  %s3 = sld [smem:[#allocation0]]
  $region64: #{tpu_custom_call.1} parent=0
    _
  %s5 = ssub.s32 1, %s3
  %s6 = scalar_select 0, %s5, %s3
  $region1: #{tpu_custom_call.1} parent=0
    #allocation2 [shape = 'u8[32768]{0}', space=vmem, size = 0x8000, scoped, tag = 'input window, operand 0']
    #allocation3 [shape = 'u8[8192]{0}', space=vmem, size = 0x2000, scoped, tag = 'output window, operand 0']
    #allocation4 [shape = 's32[2]{0}', space=sflag, size = 0x8, scoped, tag = 'scoped memory for tpu_custom_call.1']
    %7 = vsyncpa [#allocation4], 0
    %s8 = scalar_lea.sflag [#allocation4], 1
    %9 = vsyncpa %s8, 0
    loop: start=0, step=1, limit=4
    $region2: #{tpu_custom_call.1} parent=1 // loop_pre_header
      _
    $region3: #{tpu_custom_call.1} parent=1 // loop_header
      %s11 = sphi 0, %s15
      %p12 = scmp.ge.s32.totalorder %s11, 4
      %s21 = sphi 0, %s23
      %s24 = sphi 0, %s21
      %s25 = sphi 0, %s24
      %s41 = sphi 0, %s25
      %s45 = sphi 0, %s45
      %s47 = sphi 0, %s45
      %s48 = sphi 0, %s47
      %s62 = sphi 0, %s48
      %s68 = sphi 0, %s70
      %s71 = sphi 0, %s68
      %s72 = sphi 0, %s71
      %s88 = sphi 0, %s72
    $region4: #{tpu_custom_call.1} parent=1 // loop_header_branch
      %14 = sbr.rel (%p12) target = $region8
    $region5: #{tpu_custom_call.1} parent=1 // loop_body
      %s16 = ssub.s32 %s11, 1
      %s17 = ssub.s32 %s11, 2
      %s18 = sadd.s32 %s11, 1
      %s19 = ssub.s32 %s11, %s18
      %p20 = scmp.eq.s32.totalorder %s19, 0
      %s22 = sadd.s32 %s21, 1
      %s23 = scalar_select %p20, %s21, %s22
      %p26 = pneg %p20
      %p27 = scmp.eq.s32.totalorder %s11, 1
      %p28 = por %p26, %p27
      %p29 = scmp.ne.s32.totalorder %s21, %s24
      %p30 = scmp.eq.s32.totalorder %s11, 0
      %p31 = por %p29, %p30
      %p32 = scmp.ne.s32.totalorder %s21, %s24
      %p33 = scmp.eq.s32.totalorder %s16, 1
      %p34 = por %p32, %p33
      %p35 = scmp.ne.s32.totalorder %s24, %s25
      %p36 = scmp.eq.s32.totalorder %s16, 0
      %p37 = por %p35, %p36
      %p38 = scmp.ne.s32.totalorder %s24, %s25
      %p39 = scmp.eq.s32.totalorder %s17, 1
      %p40 = por %p38, %p39
      %p42 = scmp.ne.s32.totalorder %s25, %s41
      %p43 = scmp.eq.s32.totalorder %s17, 0
      %p44 = por %p42, %p43
      %s46 = sadd.s32 %s45, 1
      %p49 = scmp.eq.s32.totalorder %s11, 1
      %p50 = scmp.ne.s32.totalorder %s45, %s47
      %p51 = scmp.eq.s32.totalorder %s11, 0
      %p52 = por %p50, %p51
      %p53 = scmp.ne.s32.totalorder %s45, %s47
      %p54 = scmp.eq.s32.totalorder %s16, 1
      %p55 = por %p53, %p54
      %p56 = scmp.ne.s32.totalorder %s47, %s48
      %p57 = scmp.eq.s32.totalorder %s16, 0
      %p58 = por %p56, %p57
      %p59 = scmp.ne.s32.totalorder %s47, %s48
      %p60 = scmp.eq.s32.totalorder %s17, 1
      %p61 = por %p59, %p60
      %p63 = scmp.ne.s32.totalorder %s48, %s62
      %p64 = scmp.eq.s32.totalorder %s17, 0
      %p65 = por %p63, %p64
      %s66 = ssub.s32 %s11, %s18
      %p67 = scmp.eq.s32.totalorder %s66, 0
      %s69 = sadd.s32 %s68, 1
      %s70 = scalar_select %p67, %s68, %s69
      %p73 = pneg %p67
      %p74 = scmp.eq.s32.totalorder %s11, 1
      %p75 = por %p73, %p74
      %p76 = scmp.ne.s32.totalorder %s68, %s71
      %p77 = scmp.eq.s32.totalorder %s11, 0
      %p78 = por %p76, %p77
      %p79 = scmp.ne.s32.totalorder %s68, %s71
      %p80 = scmp.eq.s32.totalorder %s16, 1
      %p81 = por %p79, %p80
      %p82 = scmp.ne.s32.totalorder %s71, %s72
      %p83 = scmp.eq.s32.totalorder %s16, 0
      %p84 = por %p82, %p83
      %p85 = scmp.ne.s32.totalorder %s71, %s72
      %p86 = scmp.eq.s32.totalorder %s17, 1
      %p87 = por %p85, %p86
      %p89 = scmp.ne.s32.totalorder %s72, %s88
      %p90 = scmp.eq.s32.totalorder %s17, 0
      %p91 = por %p89, %p90
      %p92 = scmp.le.s32.totalorder 1, %s11
      %p93 = scmp.lt.s32.totalorder %s11, 3
      %p94 = pnand %p92, %p93
      %p95 = pneg %p94
      // Predicated region
      $region9: #{tpu_custom_call.1} parent=5 // pred_check
        _
      $region10: #{tpu_custom_call.1} parent=5 // pred_check_branch
        %97 = sbr.rel (%p94) target = $region12
      $region11: #{tpu_custom_call.1} parent=5 // pred_region
        %s98 = ssub.s32 %s11, 1
        // Predicated region
        $region13: #{tpu_custom_call.1} parent=11 // pred_check
          %p99 = pneg %p58
        $region14: #{tpu_custom_call.1} parent=11 // pred_check_branch
          %101 = sbr.rel (%p99) target = $region16
        $region15: #{tpu_custom_call.1} parent=11 // pred_region
          _
        $region16: #{tpu_custom_call.1} parent=11 // pred_fallthru
          _
      $region12: #{tpu_custom_call.1} parent=5 // pred_fallthru
        _
      %p102 = scmp.lt.s32.totalorder %s11, 2
      // Predicated region
      $region17: #{tpu_custom_call.1} parent=5 // pred_check
        %p103 = pneg %p102
      $region18: #{tpu_custom_call.1} parent=5 // pred_check_branch
        %105 = sbr.rel (%p103) target = $region20
      $region19: #{tpu_custom_call.1} parent=5 // pred_region
        // Predicated region
        $region21: #{tpu_custom_call.1} parent=19 // pred_check
          %p106 = pneg %p31
        $region22: #{tpu_custom_call.1} parent=19 // pred_check_branch
          %108 = sbr.rel (%p106) target = $region24
        $region23: #{tpu_custom_call.1} parent=19 // pred_region
          %s109 = sand.u32 %s21, 1
          %s110 = sand.u32 %s21, 1
          %s111 = smul.addr %s110, 32
          %s112 = scalar_lea.vmem [#allocation2], %s111
          %s113 = smul.u32 2, %s11
          %s114 = smul.addr %s113, 8
          %s115 = scalar_lea.vmem %s0, %s114
          // Predicated region
          $region25: #{tpu_custom_call.1} parent=23 // pred_check
            _
          $region26: #{tpu_custom_call.1} parent=23 // pred_check_branch
            %117 = sbr.rel (0) target = $region28
          $region27: #{tpu_custom_call.1} parent=23 // pred_region
            // Predicated region
            $region29: #{tpu_custom_call.1} parent=27 // pred_check
              _
            $region30: #{tpu_custom_call.1} parent=27 // pred_check_branch
              %119 = sbr.rel (0) target = $region32
            $region31: #{tpu_custom_call.1} parent=27 // pred_region
              loop: start=0, step=1, limit=1
              $region33: #{tpu_custom_call.1} parent=31 // loop_pre_header
                _
              $region34: #{tpu_custom_call.1} parent=31 // loop_header
                %s121 = sphi 0, %s125
                %p122 = scmp.ge.s32.totalorder %s121, 1
                %s126 = sphi %s115, %s115
                %s127 = sphi %s112, %s112
              $region35: #{tpu_custom_call.1} parent=31 // loop_header_branch
                %124 = sbr.rel (%p122) target = $region39
              $region36: #{tpu_custom_call.1} parent=31 // loop_body
                %v128 = vld [vmem:[%s126] sm:$0xff]
                %129 = vst [vmem:[%s127] sm:$0xff] %v128
                %v130 = vld [vmem:[%s126 + $0x8] sm:$0xff]
                %131 = vst [vmem:[%s127 + $0x8] sm:$0xff] %v130
                %v132 = vld [vmem:[%s126 + $0x20] sm:$0xff]
                %133 = vst [vmem:[%s127 + $0x10] sm:$0xff] %v132
                %v134 = vld [vmem:[%s126 + $0x28] sm:$0xff]
                %135 = vst [vmem:[%s127 + $0x18] sm:$0xff] %v134
              $region37: #{tpu_custom_call.1} parent=31 // loop_footer
                %s125 = sadd.s32 1, %s121
              $region38: #{tpu_custom_call.1} parent=31 // loop_footer_branch
                %120 = sbr.rel target = $region34
              $region39: #{tpu_custom_call.1} parent=31 // loop_exit
                _
            $region32: #{tpu_custom_call.1} parent=27 // pred_fallthru
              _
            // Predicated region
            $region40: #{tpu_custom_call.1} parent=27 // pred_check
              _
            $region41: #{tpu_custom_call.1} parent=27 // pred_check_branch
              %137 = sbr.rel target = $region43
            $region42: #{tpu_custom_call.1} parent=27 // pred_region
              _
            $region43: #{tpu_custom_call.1} parent=27 // pred_fallthru
              _
          $region28: #{tpu_custom_call.1} parent=23 // pred_fallthru
            _
          %138 = vnop
        $region24: #{tpu_custom_call.1} parent=19 // pred_fallthru
          _
      $region20: #{tpu_custom_call.1} parent=5 // pred_fallthru
        _
      %p139 = scmp.le.s32.totalorder 1, %s11
      %p140 = scmp.lt.s32.totalorder %s11, 3
      %p141 = pnand %p139, %p140
      %p142 = pneg %p141
      // Predicated region
      $region44: #{tpu_custom_call.1} parent=5 // pred_check
        _
      $region45: #{tpu_custom_call.1} parent=5 // pred_check_branch
        %144 = sbr.rel (%p141) target = $region47
      $region46: #{tpu_custom_call.1} parent=5 // pred_region
        %s145 = ssub.s32 %s11, 1
        %s146 = sand.u32 %s24, 1
        %s147 = sand.u32 %s24, 1
        %s148 = smul.addr %s147, 32
        %s149 = scalar_lea.vmem [#allocation2], %s148
        // Predicated region
        $region48: #{tpu_custom_call.1} parent=46 // pred_check
          %p150 = pneg %p37
        $region49: #{tpu_custom_call.1} parent=46 // pred_check_branch
          %152 = sbr.rel (%p150) target = $region51
        $region50: #{tpu_custom_call.1} parent=46 // pred_region
          _
        $region51: #{tpu_custom_call.1} parent=46 // pred_fallthru
          _
        %s153 = sand.u32 %s24, 1
        %s154 = sand.u32 %s24, 1
        %s155 = smul.addr %s154, 32
        %s156 = scalar_lea.vmem [#allocation2], %s155
        %p157 = pneg %p37
        %p158 = pneg %p34
        %p159 = pneg %p58
        %p160 = pneg %p55
        %p161 = pneg %p84
        %p162 = pneg %p81
        %s163 = sand.u32 %s71, 1
        %s164 = scalar_lea.sflag [#allocation4], %s163
        %s165 = sand.u32 %s71, 1
        %s166 = smul.addr %s165, 8
        %s167 = scalar_lea.vmem [#allocation3], %s166
        %s168 = smul.u32 2, %s16
        %s169 = smul.u32 2, %s16
        %v170 = vld [vmem:[%s149] sm:$0xff]
        %v171 = vld [vmem:[%s149 + $0x8] sm:$0xff]
        %v172 = vld [vmem:[%s149 + $0x10] sm:$0xf]
        %v173 = vld [vmem:[%s149 + $0x18] sm:$0xf]
        %v174 = vld [vmem:[%s1] sm:$0xff]
        %v175 = vld [vmem:[%s1 + $0x8] sm:$0xff]
        %v176 = vld [vmem:[%s1 + $0x10] sm:$0xff]
        %v177 = vld [vmem:[%s1 + $0x18] sm:$0xff]
        %v178 = vld [vmem:[%s1 + $0x20] sm:$0xff]
        %v179 = vld [vmem:[%s1 + $0x28] sm:$0xff]
        %v180 = vld [vmem:[%s1 + $0x30] sm:$0xff]
        %v181 = vld [vmem:[%s1 + $0x38] sm:$0xff]
        %v182 = vld [vmem:[%s1 + $0x40] sm:$0xff]
        %v183 = vld [vmem:[%s1 + $0x48] sm:$0xff]
        %v184 = vld [vmem:[%s1 + $0x50] sm:$0xff]
        %v185 = vld [vmem:[%s1 + $0x58] sm:$0xff]
        %v186 = vld [vmem:[%s1 + $0x60] sm:$0xff]
        %v187 = vld [vmem:[%s1 + $0x68] sm:$0xff]
        %v188 = vld [vmem:[%s1 + $0x70] sm:$0xff]
        %190 = vset.pattern.permute.xlu0 0
        %191 = vperm.xlu0 %190, %v186
        %v192 = vpop.permute.xlu0 %191
        %195 = vset.pattern.permute.xlu0 0
        %196 = vperm.xlu0 %195, %v187
        %v197 = vpop.permute.xlu0 %196
        %200 = vset.pattern.permute.xlu0 0
        %201 = vperm.xlu0 %200, %v188
        %v202 = vpop.permute.xlu0 %201
        %vm204 = vcmask 80896
        %v206 = vsel %vm204, %v174, 0
        %v209 = vsel %vm204, %v175, 0
        %v212 = vsel %vm204, %v176, 0
        %vm214 = vcmask 1041408
        %v216 = vsel %vm214, %v172, 0
        %v219 = vsel %vm214, %v173, 0
        %221 = vmatpush.msra.mxu0 0.0
        %222 = vmatpush.msra.mxu0 0.0
        %223 = vmatpush.msra.mxu0 0.0
        %224 = vmatpush.msra.mxu0 0.0
        %225 = vmatpush.msra.mxu0 0.0
        %226 = vmatpush.msra.mxu0 0.0
        %227 = vmatpush.msra.mxu0 0.0
        %228 = vmatpush.msra.mxu0 0.0
        %229 = vmatpush.msra.mxu0 0.0
        %230 = vmatpush.msra.mxu0 0.0
        %231 = vmatpush.msra.mxu0 0.0
        %232 = vmatpush.msra.mxu0 0.0
        %233 = vmatpush.msra.mxu0 0.0
        %234 = vmatpush.msra.mxu0 0.0
        %235 = vmatpush.msra.mxu0 %v216
        %236 = vmatpush.msra.mxu0 %v170
        %237 = vmatmul.f32.gmra.mxu0 %v206
        %v238 = vpop.f32.mrf.mxu0
        %v239 = vadd.f32 %v192, %v238
        %240 = vmatmul.f32.gmra.mxu0 %v209
        %v241 = vpop.f32.mrf.mxu0
        %v242 = vadd.f32 %v197, %v241
        %243 = vmatmul.f32.gmra.mxu0 %v212
        %v244 = vpop.f32.mrf.mxu0
        %v245 = vadd.f32 %v202, %v244
        %246 = vdwg.mxu0
        %247 = vmatpush.msra.mxu0 0.0
        %248 = vmatpush.msra.mxu0 0.0
        %249 = vmatpush.msra.mxu0 0.0
        %250 = vmatpush.msra.mxu0 0.0
        %251 = vmatpush.msra.mxu0 0.0
        %252 = vmatpush.msra.mxu0 0.0
        %253 = vmatpush.msra.mxu0 0.0
        %254 = vmatpush.msra.mxu0 0.0
        %255 = vmatpush.msra.mxu0 0.0
        %256 = vmatpush.msra.mxu0 0.0
        %257 = vmatpush.msra.mxu0 0.0
        %258 = vmatpush.msra.mxu0 0.0
        %259 = vmatpush.msra.mxu0 0.0
        %260 = vmatpush.msra.mxu0 0.0
        %261 = vmatpush.msra.mxu0 %v219
        %262 = vmatpush.msra.mxu0 %v171
        %263 = vmatmul.f32.gmra.mxu0 %v206
        %v264 = vpop.f32.mrf.mxu0
        %v265 = vadd.f32 %v192, %v264
        %266 = vmatmul.f32.gmra.mxu0 %v209
        %v267 = vpop.f32.mrf.mxu0
        %v268 = vadd.f32 %v197, %v267
        %269 = vmatmul.f32.gmra.mxu0 %v212
        %v270 = vpop.f32.mrf.mxu0
        %v271 = vadd.f32 %v202, %v270
        %272 = vdwg.mxu0
        %vm273 = vcmp.gt.f32.partialorder %v239, 0.0
        %vm274 = vcmp.gt.f32.partialorder %v265, 0.0
        %vm275 = vcmp.gt.f32.partialorder %v242, 0.0
        %vm276 = vcmp.gt.f32.partialorder %v268, 0.0
        %vm277 = vcmp.gt.f32.partialorder %v245, 0.0
        %vm278 = vcmp.gt.f32.partialorder %v271, 0.0
        %v279 = vmul.f32 %v239, 0.01
        %v280 = vmul.f32 %v265, 0.01
        %v281 = vmul.f32 %v242, 0.01
        %v282 = vmul.f32 %v268, 0.01
        %v283 = vmul.f32 %v245, 0.01
        %v284 = vmul.f32 %v271, 0.01
        %v285 = vsel %vm273, %v239, %v279
        %v286 = vsel %vm274, %v265, %v280
        %v287 = vsel %vm275, %v242, %v281
        %v288 = vsel %vm276, %v268, %v282
        %v289 = vsel %vm277, %v245, %v283
        %v290 = vsel %vm278, %v271, %v284
        %291 = vset.pattern.permute.xlu0 1
        %292 = vperm.xlu0 %291, %v186
        %v293 = vpop.permute.xlu0 %292
        %295 = vset.pattern.permute.xlu0 1
        %296 = vperm.xlu0 %295, %v187
        %v297 = vpop.permute.xlu0 %296
        %299 = vset.pattern.permute.xlu0 1
        %300 = vperm.xlu0 %299, %v188
        %v301 = vpop.permute.xlu0 %300
        %vm303 = vcmask 195584
        %v305 = vsel %vm303, %v177, 0
        %v308 = vsel %vm303, %v178, 0
        %v311 = vsel %vm303, %v179, 0
        %313 = vmatpush.msra.mxu0 0.0
        %314 = vmatpush.msra.mxu0 0.0
        %315 = vmatpush.msra.mxu0 0.0
        %316 = vmatpush.msra.mxu0 0.0
        %317 = vmatpush.msra.mxu0 0.0
        %318 = vmatpush.msra.mxu0 0.0
        %319 = vmatpush.msra.mxu0 0.0
        %320 = vmatpush.msra.mxu0 0.0
        %321 = vmatpush.msra.mxu0 0.0
        %322 = vmatpush.msra.mxu0 0.0
        %323 = vmatpush.msra.mxu0 0.0
        %324 = vmatpush.msra.mxu0 0.0
        %325 = vmatpush.msra.mxu0 0.0
        %326 = vmatpush.msra.mxu0 %v289
        %327 = vmatpush.msra.mxu0 %v287
        %328 = vmatpush.msra.mxu0 %v285
        %329 = vmatmul.f32.gmra.mxu0 %v305
        %v330 = vpop.f32.mrf.mxu0
        %v331 = vadd.f32 %v293, %v330
        %332 = vmatmul.f32.gmra.mxu0 %v308
        %v333 = vpop.f32.mrf.mxu0
        %v334 = vadd.f32 %v297, %v333
        %335 = vmatmul.f32.gmra.mxu0 %v311
        %v336 = vpop.f32.mrf.mxu0
        %v337 = vadd.f32 %v301, %v336
        %338 = vdwg.mxu0
        %339 = vmatpush.msra.mxu0 0.0
        %340 = vmatpush.msra.mxu0 0.0
        %341 = vmatpush.msra.mxu0 0.0
        %342 = vmatpush.msra.mxu0 0.0
        %343 = vmatpush.msra.mxu0 0.0
        %344 = vmatpush.msra.mxu0 0.0
        %345 = vmatpush.msra.mxu0 0.0
        %346 = vmatpush.msra.mxu0 0.0
        %347 = vmatpush.msra.mxu0 0.0
        %348 = vmatpush.msra.mxu0 0.0
        %349 = vmatpush.msra.mxu0 0.0
        %350 = vmatpush.msra.mxu0 0.0
        %351 = vmatpush.msra.mxu0 0.0
        %352 = vmatpush.msra.mxu0 %v290
        %353 = vmatpush.msra.mxu0 %v288
        %354 = vmatpush.msra.mxu0 %v286
        %355 = vmatmul.f32.gmra.mxu0 %v305
        %v356 = vpop.f32.mrf.mxu0
        %v357 = vadd.f32 %v293, %v356
        %358 = vmatmul.f32.gmra.mxu0 %v308
        %v359 = vpop.f32.mrf.mxu0
        %v360 = vadd.f32 %v297, %v359
        %361 = vmatmul.f32.gmra.mxu0 %v311
        %v362 = vpop.f32.mrf.mxu0
        %v363 = vadd.f32 %v301, %v362
        %364 = vdwg.mxu0
        %vm365 = vcmp.gt.f32.partialorder %v331, 0.0
        %vm366 = vcmp.gt.f32.partialorder %v357, 0.0
        %vm367 = vcmp.gt.f32.partialorder %v334, 0.0
        %vm368 = vcmp.gt.f32.partialorder %v360, 0.0
        %vm369 = vcmp.gt.f32.partialorder %v337, 0.0
        %vm370 = vcmp.gt.f32.partialorder %v363, 0.0
        %v371 = vmul.f32 %v331, 0.01
        %v372 = vmul.f32 %v357, 0.01
        %v373 = vmul.f32 %v334, 0.01
        %v374 = vmul.f32 %v360, 0.01
        %v375 = vmul.f32 %v337, 0.01
        %v376 = vmul.f32 %v363, 0.01
        %v377 = vsel %vm365, %v331, %v371
        %v378 = vsel %vm366, %v357, %v372
        %v379 = vsel %vm367, %v334, %v373
        %v380 = vsel %vm368, %v360, %v374
        %v381 = vsel %vm369, %v337, %v375
        %v382 = vsel %vm370, %v363, %v376
        %383 = vset.pattern.permute.xlu0 2
        %384 = vperm.xlu0 %383, %v186
        %v385 = vpop.permute.xlu0 %384
        %387 = vset.pattern.permute.xlu0 2
        %388 = vperm.xlu0 %387, %v187
        %v389 = vpop.permute.xlu0 %388
        %391 = vset.pattern.permute.xlu0 2
        %392 = vperm.xlu0 %391, %v188
        %v393 = vpop.permute.xlu0 %392
        %v396 = vsel %vm303, %v180, 0
        %v399 = vsel %vm303, %v181, 0
        %v402 = vsel %vm303, %v182, 0
        %404 = vmatpush.msra.mxu0 0.0
        %405 = vmatpush.msra.mxu0 0.0
        %406 = vmatpush.msra.mxu0 0.0
        %407 = vmatpush.msra.mxu0 0.0
        %408 = vmatpush.msra.mxu0 0.0
        %409 = vmatpush.msra.mxu0 0.0
        %410 = vmatpush.msra.mxu0 0.0
        %411 = vmatpush.msra.mxu0 0.0
        %412 = vmatpush.msra.mxu0 0.0
        %413 = vmatpush.msra.mxu0 0.0
        %414 = vmatpush.msra.mxu0 0.0
        %415 = vmatpush.msra.mxu0 0.0
        %416 = vmatpush.msra.mxu0 0.0
        %417 = vmatpush.msra.mxu0 %v381
        %418 = vmatpush.msra.mxu0 %v379
        %419 = vmatpush.msra.mxu0 %v377
        %420 = vmatmul.f32.gmra.mxu0 %v396
        %v421 = vpop.f32.mrf.mxu0
        %v422 = vadd.f32 %v385, %v421
        %423 = vmatmul.f32.gmra.mxu0 %v399
        %v424 = vpop.f32.mrf.mxu0
        %v425 = vadd.f32 %v389, %v424
        %426 = vmatmul.f32.gmra.mxu0 %v402
        %v427 = vpop.f32.mrf.mxu0
        %v428 = vadd.f32 %v393, %v427
        %429 = vdwg.mxu0
        %430 = vmatpush.msra.mxu0 0.0
        %431 = vmatpush.msra.mxu0 0.0
        %432 = vmatpush.msra.mxu0 0.0
        %433 = vmatpush.msra.mxu0 0.0
        %434 = vmatpush.msra.mxu0 0.0
        %435 = vmatpush.msra.mxu0 0.0
        %436 = vmatpush.msra.mxu0 0.0
        %437 = vmatpush.msra.mxu0 0.0
        %438 = vmatpush.msra.mxu0 0.0
        %439 = vmatpush.msra.mxu0 0.0
        %440 = vmatpush.msra.mxu0 0.0
        %441 = vmatpush.msra.mxu0 0.0
        %442 = vmatpush.msra.mxu0 0.0
        %443 = vmatpush.msra.mxu0 %v382
        %444 = vmatpush.msra.mxu0 %v380
        %445 = vmatpush.msra.mxu0 %v378
        %446 = vmatmul.f32.gmra.mxu0 %v396
        %v447 = vpop.f32.mrf.mxu0
        %v448 = vadd.f32 %v385, %v447
        %449 = vmatmul.f32.gmra.mxu0 %v399
        %v450 = vpop.f32.mrf.mxu0
        %v451 = vadd.f32 %v389, %v450
        %452 = vmatmul.f32.gmra.mxu0 %v402
        %v453 = vpop.f32.mrf.mxu0
        %v454 = vadd.f32 %v393, %v453
        %455 = vdwg.mxu0
        %vm456 = vcmp.gt.f32.partialorder %v422, 0.0
        %vm457 = vcmp.gt.f32.partialorder %v448, 0.0
        %vm458 = vcmp.gt.f32.partialorder %v425, 0.0
        %vm459 = vcmp.gt.f32.partialorder %v451, 0.0
        %vm460 = vcmp.gt.f32.partialorder %v428, 0.0
        %vm461 = vcmp.gt.f32.partialorder %v454, 0.0
        %v462 = vmul.f32 %v422, 0.01
        %v463 = vmul.f32 %v448, 0.01
        %v464 = vmul.f32 %v425, 0.01
        %v465 = vmul.f32 %v451, 0.01
        %v466 = vmul.f32 %v428, 0.01
        %v467 = vmul.f32 %v454, 0.01
        %v468 = vsel %vm456, %v422, %v462
        %v469 = vsel %vm457, %v448, %v463
        %v470 = vsel %vm458, %v425, %v464
        %v471 = vsel %vm459, %v451, %v465
        %v472 = vsel %vm460, %v428, %v466
        %v473 = vsel %vm461, %v454, %v467
        %474 = vset.pattern.permute.xlu0 3
        %475 = vperm.xlu0 %474, %v186
        %v476 = vpop.permute.xlu0 %475
        %478 = vset.pattern.permute.xlu0 3
        %479 = vperm.xlu0 %478, %v187
        %v480 = vpop.permute.xlu0 %479
        %482 = vset.pattern.permute.xlu0 3
        %483 = vperm.xlu0 %482, %v188
        %v484 = vpop.permute.xlu0 %483
        %v486 = vsel %vm303, %v183, 0
        %v489 = vsel %vm303, %v184, 0
        %v492 = vsel %vm303, %v185, 0
        %494 = vmatpush.msra.mxu0 0.0
        %495 = vmatpush.msra.mxu0 0.0
        %496 = vmatpush.msra.mxu0 0.0
        %497 = vmatpush.msra.mxu0 0.0
        %498 = vmatpush.msra.mxu0 0.0
        %499 = vmatpush.msra.mxu0 0.0
        %500 = vmatpush.msra.mxu0 0.0
        %501 = vmatpush.msra.mxu0 0.0
        %502 = vmatpush.msra.mxu0 0.0
        %503 = vmatpush.msra.mxu0 0.0
        %504 = vmatpush.msra.mxu0 0.0
        %505 = vmatpush.msra.mxu0 0.0
        %506 = vmatpush.msra.mxu0 0.0
        %507 = vmatpush.msra.mxu0 %v472
        %508 = vmatpush.msra.mxu0 %v470
        %509 = vmatpush.msra.mxu0 %v468
        %510 = vmatmul.f32.gmra.mxu0 %v486
        %v511 = vpop.f32.mrf.mxu0
        %v512 = vadd.f32 %v476, %v511
        %513 = vmatmul.f32.gmra.mxu0 %v489
        %v514 = vpop.f32.mrf.mxu0
        %v515 = vadd.f32 %v480, %v514
        %516 = vmatmul.f32.gmra.mxu0 %v492
        %v517 = vpop.f32.mrf.mxu0
        %518 = vdwg.mxu0
        %519 = vmatpush.msra.mxu0 0.0
        %520 = vmatpush.msra.mxu0 0.0
        %521 = vmatpush.msra.mxu0 0.0
        %522 = vmatpush.msra.mxu0 0.0
        %523 = vmatpush.msra.mxu0 0.0
        %524 = vmatpush.msra.mxu0 0.0
        %525 = vmatpush.msra.mxu0 0.0
        %526 = vmatpush.msra.mxu0 0.0
        %527 = vmatpush.msra.mxu0 0.0
        %528 = vmatpush.msra.mxu0 0.0
        %529 = vmatpush.msra.mxu0 0.0
        %530 = vmatpush.msra.mxu0 0.0
        %531 = vmatpush.msra.mxu0 0.0
        %532 = vmatpush.msra.mxu0 %v473
        %533 = vmatpush.msra.mxu0 %v471
        %534 = vmatpush.msra.mxu0 %v469
        %535 = vmatmul.f32.gmra.mxu0 %v486
        %v536 = vpop.f32.mrf.mxu0
        %v537 = vadd.f32 %v476, %v536
        %538 = vmatmul.f32.gmra.mxu0 %v489
        %v539 = vpop.f32.mrf.mxu0
        %v540 = vadd.f32 %v480, %v539
        %541 = vmatmul.f32.gmra.mxu0 %v492
        %v542 = vpop.f32.mrf.mxu0
        %543 = vdwg.mxu0
        %vm544 = vcmp.ge.f32.partialorder %v172, 0.0
        %vm545 = vcmp.ge.f32.partialorder %v173, 0.0
        %vm546 = vcmp.lt.f32.partialorder %v172, 0.5
        %vm547 = vcmp.lt.f32.partialorder %v173, 0.5
        %vm548 = vmand %vm544, %vm546
        %vm549 = vmand %vm545, %vm547
        %vm550 = vcmp.eq.f32.partialorder %v172, 1.0
        %vm551 = vcmp.eq.f32.partialorder %v173, 1.0
        %v552 = vsel %vm550, 1, 0
        %v553 = vsel %vm551, 1, 0
        %v554 = vrot.slane %v552, 7
        %v555 = vrot.slane %v553, 7
        %vm556 = vcmp.ne.s32.totalorder %v554, 0
        %vm557 = vcmp.ne.s32.totalorder %v555, 0
        %vm558 = vmand %vm548, %vm556
        %vm559 = vmand %vm549, %vm557
        %v560 = vsel %vm558, 1, 0
        %v561 = vsel %vm559, 1, 0
        %v562 = vcvt.s32.f32 %v560
        %v563 = vcvt.s32.f32 %v561
        %v564 = vperm.slane %v562, 3
        %v565 = vperm.slane %v563, 3
        %v566 = vmul.f32 %v564, %v512
        %v567 = vmul.f32 %v565, %v537
        %v568 = vadd.f32 %v566, 0.0
        %v569 = vadd.f32 %v567, 0.0
        %vm570 = vcmp.ge.f32.partialorder %v172, 0.5
        %vm571 = vcmp.ge.f32.partialorder %v173, 0.5
        %vm572 = vcmp.lt.f32.partialorder %v172, 1.0
        %vm573 = vcmp.lt.f32.partialorder %v173, 1.0
        %vm574 = vmand %vm570, %vm572
        %vm575 = vmand %vm571, %vm573
        %vm576 = vmand %vm574, %vm556
        %vm577 = vmand %vm575, %vm557
        %v578 = vsel %vm576, 1, 0
        %v579 = vsel %vm577, 1, 0
        %v580 = vcvt.s32.f32 %v578
        %v581 = vcvt.s32.f32 %v579
        %v582 = vperm.slane %v580, 3
        %v583 = vperm.slane %v581, 3
        %v584 = vmul.f32 %v582, %v512
        %v585 = vmul.f32 %v583, %v537
        %v588 = vrot.slane %v584, 4
        %v589 = vrot.slane %v585, 4
        %v592 = vadd.f32 %v568, %v588
        %v593 = vadd.f32 %v569, %v589
        %vm594 = vmand %vm544, %vm572
        %vm595 = vmand %vm545, %vm573
        %vm596 = vcmp.eq.f32.partialorder %v172, 2.0
        %vm597 = vcmp.eq.f32.partialorder %v173, 2.0
        %v598 = vsel %vm596, 1, 0
        %v599 = vsel %vm597, 1, 0
        %v600 = vrot.slane %v598, 7
        %v601 = vrot.slane %v599, 7
        %vm602 = vcmp.ne.s32.totalorder %v600, 0
        %vm603 = vcmp.ne.s32.totalorder %v601, 0
        %vm604 = vmand %vm594, %vm602
        %vm605 = vmand %vm595, %vm603
        %v606 = vsel %vm604, 1, 0
        %v607 = vsel %vm605, 1, 0
        %v608 = vcvt.s32.f32 %v606
        %v609 = vcvt.s32.f32 %v607
        %v610 = vperm.slane %v608, 3
        %v611 = vperm.slane %v609, 3
        %v612 = vmul.f32 %v610, %v515
        %v613 = vmul.f32 %v611, %v540
        %v614 = vadd.f32 %v592, %v612
        %v615 = vadd.f32 %v593, %v613
        %vm616 = vcmp.eq.f32.partialorder %v172, 0.0
        %vm617 = vcmp.eq.f32.partialorder %v173, 0.0
        %v618 = vsel %vm616, 1, 0
        %v619 = vsel %vm617, 1, 0
        %v620 = vrot.slane %v618, 7
        %v621 = vrot.slane %v619, 7
        %vm622 = vcmp.ne.s32.totalorder %v620, 0
        %vm623 = vcmp.ne.s32.totalorder %v621, 0
        %vm624 = vmand %vm594, %vm622
        %vm625 = vmand %vm595, %vm623
        %v626 = vsel %vm624, 1, 0
        %v627 = vsel %vm625, 1, 0
        %v628 = vcvt.s32.f32 %v626
        %v629 = vcvt.s32.f32 %v627
        %v630 = vperm.slane %v628, 3
        %v631 = vperm.slane %v629, 3
        %v632 = vmul.f32 %v630, %v515
        %v633 = vmul.f32 %v631, %v540
        %v636 = vrot.slane %v632, 4
        %v637 = vrot.slane %v633, 4
        %v640 = vadd.f32 %v614, %v636
        %v641 = vadd.f32 %v615, %v637
        %v644 = vrot.slane %v641, 4
        %vm645 = vcmask 1043456
        %v646 = vsel %vm645, %v640, %v644
        %648 = vst [vmem:[%s167] sm:$0xff] %v646
        %s649 = sand.u32 %s71, 1
        %s650 = scalar_lea.sflag [#allocation4], %s649
        %s651 = sand.u32 %s71, 1
        %s652 = smul.addr %s651, 8
        %s653 = scalar_lea.vmem [#allocation3], %s652
        // Predicated region
        $region52: #{tpu_custom_call.1} parent=46 // pred_check
          %p654 = pneg %p81
        $region53: #{tpu_custom_call.1} parent=46 // pred_check_branch
          %656 = sbr.rel (%p654) target = $region55
        $region54: #{tpu_custom_call.1} parent=46 // pred_region
          %s657 = smul.u32 2, %s16
          %659 = vsyncadd %s650, 0
          %s660 = smul.addr %s657, 4
          %s661 = scalar_lea.hbm %s2, %s660
          %s663 = sshll.u32 %s653, 4
          %s664 = int_to_ptr.vmem [resolvable:$true] %s663
          %s665 = sshll.u32 %s661, 4
          %s666 = int_to_ptr.hbm [resolvable:$true] %s665
          %668 = dma.vmem_to_hbm [thread:$0]  %s664, 128, %s666, %s650
        $region55: #{tpu_custom_call.1} parent=46 // pred_fallthru
          _
      $region47: #{tpu_custom_call.1} parent=5 // pred_fallthru
        _
      %p669 = scmp.le.s32.totalorder 2, %s11
      // Predicated region
      $region56: #{tpu_custom_call.1} parent=5 // pred_check
        %p670 = pneg %p669
      $region57: #{tpu_custom_call.1} parent=5 // pred_check_branch
        %672 = sbr.rel (%p670) target = $region59
      $region58: #{tpu_custom_call.1} parent=5 // pred_region
        %s673 = ssub.s32 %s11, 2
        // Predicated region
        $region60: #{tpu_custom_call.1} parent=58 // pred_check
          %p674 = pneg %p87
        $region61: #{tpu_custom_call.1} parent=58 // pred_check_branch
          %676 = sbr.rel (%p674) target = $region63
        $region62: #{tpu_custom_call.1} parent=58 // pred_region
          %s677 = sand.u32 %s72, 1
          %s678 = scalar_lea.sflag [#allocation4], %s677
          %s679 = sand.u32 %s72, 1
          %s680 = smul.addr %s679, 8
          %s681 = scalar_lea.vmem [#allocation3], %s680
          %683 = dma.done %s678, 128
        $region63: #{tpu_custom_call.1} parent=58 // pred_fallthru
          _
      $region59: #{tpu_custom_call.1} parent=5 // pred_fallthru
        _
    $region6: #{tpu_custom_call.1} parent=1 // loop_footer
      %s15 = sadd.s32 1, %s11
    $region7: #{tpu_custom_call.1} parent=1 // loop_footer_branch
      %10 = sbr.rel target = $region3
    $region8: #{tpu_custom_call.1} parent=1 // loop_exit
      _
    %684 = vsyncpa [#allocation4], 1
    %s685 = scalar_lea.sflag [#allocation4], 1
    %686 = vsyncpa %s685, 1

</llo_original>
